<compile_context>
chip_gen: v6e
topology: v6e:2x2x1
jax: 0.10.0
libtpu: 0.0.40
codegen_flags: <defaults>
</compile_context>

<pallas_src>
import functools
import numpy as np
import jax
import jax.numpy as jnp
from jax.experimental import pallas as pl
from jax.experimental.pallas import tpu as pltpu


_INV_SQRT2 = 0.7071067811865476
_VMEM_LIMIT = 32 * 1024 * 1024  # explicit scoped-VMEM budget (safe on v5e/v6e/v7x)


# -----------------------------------------------------------------------------
# small in-kernel helpers
# -----------------------------------------------------------------------------

def _gelu(x):
    # exact erf-based GELU (torch.nn.GELU default)
    return 0.5 * x * (1.0 + jax.lax.erf(x * _INV_SQRT2))


def _sigmoid(x):
    return 1.0 / (1.0 + jnp.exp(-x))


def _ln(x, g, b, eps):
    mu = jnp.mean(x, axis=-1, keepdims=True)
    xc = x - mu
    var = jnp.mean(xc * xc, axis=-1, keepdims=True)
    return (xc * jax.lax.rsqrt(var + eps)) * g + b


def _dot(a, b):
    # bf16 MXU matmul with f32 accumulation
    return jnp.dot(a.astype(jnp.bfloat16), b.astype(jnp.bfloat16),
                   preferred_element_type=jnp.float32)


# -----------------------------------------------------------------------------
# generic M-tiled (row-gridded) pallas_call helper
# -----------------------------------------------------------------------------

def _tiled_spec(shape, tm):
    nd = len(shape)
    return pl.BlockSpec((tm,) + tuple(shape[1:]),
                        lambda i, _nd=nd: (i,) + (0,) * (_nd - 1))


def _full_spec(shape):
    nd = len(shape)
    return pl.BlockSpec(tuple(shape), lambda i, _nd=nd: (0,) * _nd)


def _row_call(kernel, tiled_ins, full_ins, out_shapes, tm=512):
    """Grid over leading row dim M; tiled_ins/outs share M, full_ins are whole."""
    M = tiled_ins[0].shape[0]
    tm = min(tm, M)
    grid = (pl.cdiv(M, tm),)
    in_specs = ([_tiled_spec(a.shape, tm) for a in tiled_ins]
                + [_full_spec(a.shape) for a in full_ins])
    single = not isinstance(out_shapes, (list, tuple))
    outs = [out_shapes] if single else list(out_shapes)
    out_specs = [_tiled_spec(o.shape, tm) for o in outs]
    res = pl.pallas_call(
        kernel,
        grid=grid,
        in_specs=in_specs,
        out_specs=out_specs[0] if single else out_specs,
        out_shape=outs[0] if single else outs,
        compiler_params=pltpu.CompilerParams(
            dimension_semantics=("parallel",),
            vmem_limit_bytes=_VMEM_LIMIT),
    )(*tiled_ins, *full_ins)
    return res


# -----------------------------------------------------------------------------
# kernels
# -----------------------------------------------------------------------------

def _layernorm_kernel(x_ref, g_ref, b_ref, o_ref, *, eps):
    o_ref[...] = _ln(x_ref[...], g_ref[...], b_ref[...], eps).astype(o_ref.dtype)


def layernorm_rows(x2, g, b, eps=1e-5):
    C = x2.shape[-1]
    return _row_call(functools.partial(_layernorm_kernel, eps=eps),
                     [x2], [g.reshape(1, C), b.reshape(1, C)],
                     jax.ShapeDtypeStruct(x2.shape, x2.dtype))


def _proj_qkv_cnn_kernel(x_ref, wa_ref, ba_ref, ga_ref, bna_ref,
                         wq_ref, bq_ref,
                         wc_ref, bc_ref, gc_ref, bnc_ref,
                         qkv_ref, xcnn_ref, *, eps):
    """Fused: proj_attn -> LN -> qkv  and  proj_cnn -> LN  (one pass over x)."""
    x = x_ref[...]
    xa = _ln(_dot(x, wa_ref[...]) + ba_ref[...], ga_ref[...], bna_ref[...], eps)
    qkv_ref[...] = (_dot(xa, wq_ref[...]) + bq_ref[...]).astype(qkv_ref.dtype)
    xcnn_ref[...] = _ln(_dot(x, wc_ref[...]) + bc_ref[...],
                        gc_ref[...], bnc_ref[...], eps).astype(xcnn_ref.dtype)


def _dwconv_kernel(xp_ref, w_ref, b_ref, o_ref, *, Dp, Hp, Wp, K):
    """Depthwise Conv3d ('same'), one batch per grid step (C on lanes)."""
    C = o_ref.shape[-1]
    xp = xp_ref[...]                     # (Dp+K-1, Hp+K-1, Wp+K-1, C)
    w = w_ref[...]                       # (K*K*K, C)
    acc = jnp.zeros(o_ref.shape, jnp.float32)
    idx = 0
    for kd in range(K):
        for kh in range(K):
            for kw in range(K):
                tap = xp[kd:kd + Dp, kh:kh + Hp, kw:kw + Wp, :]
                acc = acc + tap * w[idx].reshape(1, 1, 1, C)
                idx += 1
    o_ref[...] = (acc + b_ref[...].reshape(1, 1, 1, C)).astype(o_ref.dtype)


def dwconv3d(x_vol, w, b):
    B, Dp, Hp, Wp, C = x_vol.shape
    K = w.shape[0]
    p = K // 2
    xp = jnp.pad(x_vol, ((0, 0), (p, p), (p, p), (p, p), (0, 0)))
    DpP, HpP, WpP = Dp + 2 * p, Hp + 2 * p, Wp + 2 * p
    kernel = functools.partial(_dwconv_kernel, Dp=Dp, Hp=Hp, Wp=Wp, K=K)
    return pl.pallas_call(
        kernel,
        grid=(B,),
        in_specs=[
            pl.BlockSpec((None, DpP, HpP, WpP, C), lambda i: (i, 0, 0, 0, 0)),
            pl.BlockSpec((K * K * K, C), lambda i: (0, 0)),
            pl.BlockSpec((1, C), lambda i: (0, 0)),
        ],
        out_specs=pl.BlockSpec((None, Dp, Hp, Wp, C), lambda i: (i, 0, 0, 0, 0)),
        out_shape=jax.ShapeDtypeStruct((B, Dp, Hp, Wp, C), x_vol.dtype),
        compiler_params=pltpu.CompilerParams(
            dimension_semantics=("parallel",), vmem_limit_bytes=_VMEM_LIMIT),
    )(xp, w.reshape(K * K * K, C), b.reshape(1, C))


def _cnn_post_kernel(x_ref, pw_ref, pb_ref, proj_ref, pool_ref, *, eps):
    """Fused InstanceNorm3d (spatial reduce on sublanes) + GELU + global avg
    pool + 1x1 projection, one batch per grid step."""
    y = x_ref[...]                                      # (S, C)
    mu = jnp.mean(y, axis=0, keepdims=True)
    yc = y - mu
    var = jnp.mean(yc * yc, axis=0, keepdims=True)
    yg = _gelu(yc * jax.lax.rsqrt(var + eps))
    pool_ref[...] = jnp.mean(yg, axis=0, keepdims=True).astype(pool_ref.dtype)
    proj_ref[...] = (_dot(yg, pw_ref[...]) + pb_ref[...]).astype(proj_ref.dtype)


def cnn_post(y_rows, pw, pb, eps=1e-5):
    B, S, C = y_rows.shape
    Ch = pw.shape[1]
    kernel = functools.partial(_cnn_post_kernel, eps=eps)
    proj, pool = pl.pallas_call(
        kernel,
        grid=(B,),
        in_specs=[
            pl.BlockSpec((None, S, C), lambda i: (i, 0, 0)),
            pl.BlockSpec((C, Ch), lambda i: (0, 0)),
            pl.BlockSpec((1, Ch), lambda i: (0, 0)),
        ],
        out_specs=[
            pl.BlockSpec((None, S, Ch), lambda i: (i, 0, 0)),
            pl.BlockSpec((None, 1, C), lambda i: (i, 0, 0)),
        ],
        out_shape=[
            jax.ShapeDtypeStruct((B, S, Ch), y_rows.dtype),
            jax.ShapeDtypeStruct((B, 1, C), y_rows.dtype),
        ],
        compiler_params=pltpu.CompilerParams(
            dimension_semantics=("parallel",), vmem_limit_bytes=_VMEM_LIMIT),
    )(y_rows, pw, pb.reshape(1, Ch))
    return proj, pool.reshape(B, C)


def _chan_inter_kernel(p_ref, w1_ref, b1_ref, w2_ref, b2_ref, o_ref):
    """channel_interaction: 1x1 conv -> GELU -> 1x1 conv -> sigmoid (tiny)."""
    t = _gelu(jnp.dot(p_ref[...], w1_ref[...],
                      preferred_element_type=jnp.float32) + b1_ref[...])
    y = jnp.dot(t, w2_ref[...], preferred_element_type=jnp.float32) + b2_ref[...]
    o_ref[...] = _sigmoid(y).astype(o_ref.dtype)


def channel_interaction(pooled, w1, b1, w2, b2):
    B, C = pooled.shape
    Ch = w2.shape[1]
    vmem = pl.BlockSpec(memory_space=pltpu.MemorySpace.VMEM)
    return pl.pallas_call(
        _chan_inter_kernel,
        out_shape=jax.ShapeDtypeStruct((B, Ch), pooled.dtype),
        in_specs=[vmem] * 5,
        out_specs=vmem,
        compiler_params=pltpu.CompilerParams(vmem_limit_bytes=_VMEM_LIMIT),
    )(pooled, w1, b1.reshape(1, -1), w2, b2.reshape(1, -1))


def _window_attn_kernel(qkv_ref, bias_ref, ci_ref, o_ref, *, nh, hd, scale):
    """One window per grid step. Fuses q-scaling, channel-interaction v
    modulation, shared relative-position bias, softmax (approx reciprocal) and
    writes output with heads contiguous along lanes."""
    Ch = nh * hd
    qkv = qkv_ref[...]                   # (N, 3*Ch) — [q | k | v], head-major
    ci = ci_ref[...]                     # (1, Ch)   — sigmoid(channel_interaction)
    bias = bias_ref[...]                 # (nh, N, N)
    for h in range(nh):
        q = qkv[:, h * hd:(h + 1) * hd] * scale
        k = qkv[:, Ch + h * hd:Ch + (h + 1) * hd]
        v = qkv[:, 2 * Ch + h * hd:2 * Ch + (h + 1) * hd] * ci[:, h * hd:(h + 1) * hd]
        s = jax.lax.dot_general(q.astype(jnp.bfloat16), k.astype(jnp.bfloat16),
                                (((1,), (1,)), ((), ())),
                                preferred_element_type=jnp.float32)
        s = s + bias[h]
        s = s - jnp.max(s, axis=-1, keepdims=True)
        p = jnp.exp(s)
        p = p * pl.reciprocal(jnp.sum(p, axis=-1, keepdims=True), approx=True)
        oh = jnp.dot(p.astype(jnp.bfloat16), v.astype(jnp.bfloat16),
                     preferred_element_type=jnp.float32)
        o_ref[:, h * hd:(h + 1) * hd] = oh.astype(o_ref.dtype)


def window_attention(qkv_win, bias, cimod, nW, nh, hd, scale):
    """qkv_win: (B_, N, 3*Ch); bias: (nh, N, N); cimod: (B, 1, Ch)."""
    B_, N, C3 = qkv_win.shape
    Ch = nh * hd
    kernel = functools.partial(_window_attn_kernel, nh=nh, hd=hd, scale=scale)
    return pl.pallas_call(
        kernel,
        grid=(B_,),
        in_specs=[
            pl.BlockSpec((None, N, C3), lambda g: (g, 0, 0)),
            pl.BlockSpec((nh, N, N), lambda g: (0, 0, 0)),       # shared, never broadcast
            pl.BlockSpec((None, 1, Ch), lambda g: (g // nW, 0, 0)),
        ],
        out_specs=pl.BlockSpec((None, N, Ch), lambda g: (g, 0, 0)),
        out_shape=jax.ShapeDtypeStruct((B_, N, Ch), qkv_win.dtype),
        compiler_params=pltpu.CompilerParams(
            dimension_semantics=("parallel",), vmem_limit_bytes=_VMEM_LIMIT),
    )(qkv_win, bias, cimod)


def _spatial_gate_kernel(xa_ref, xc_ref, w1_ref, b1_ref, w2_ref, b2_ref, o_ref, *, eps):
    """Fused spatial_interaction (1x1 -> IN -> GELU -> 1x1) + sigmoid gate on
    x_cnn + conv_norm (InstanceNorm), one batch per grid step."""
    xa = xa_ref[...]                                     # (S, Ch)
    t = jnp.dot(xa, w1_ref[...], preferred_element_type=jnp.float32) + b1_ref[...]
    mu = jnp.mean(t, axis=0, keepdims=True)
    tc = t - mu
    var = jnp.mean(tc * tc, axis=0, keepdims=True)
    tg = _gelu(tc * jax.lax.rsqrt(var + eps))
    s2 = jnp.dot(tg, w2_ref[...], preferred_element_type=jnp.float32) + b2_ref[...]
    y = _sigmoid(s2) * xc_ref[...]                       # (S, Ch)
    mu2 = jnp.mean(y, axis=0, keepdims=True)
    yc = y - mu2
    var2 = jnp.mean(yc * yc, axis=0, keepdims=True)
    o_ref[...] = (yc * jax.lax.rsqrt(var2 + eps)).astype(o_ref.dtype)


def spatial_gate(x_atten_rows, x_cnn_rows, w1, b1, w2, b2, eps=1e-5):
    B, S, Ch = x_atten_rows.shape
    Cm = w1.shape[1]
    kernel = functools.partial(_spatial_gate_kernel, eps=eps)
    return pl.pallas_call(
        kernel,
        grid=(B,),
        in_specs=[
            pl.BlockSpec((None, S, Ch), lambda i: (i, 0, 0)),
            pl.BlockSpec((None, S, Ch), lambda i: (i, 0, 0)),
            pl.BlockSpec((Ch, Cm), lambda i: (0, 0)),
            pl.BlockSpec((1, Cm), lambda i: (0, 0)),
            pl.BlockSpec((Cm, 1), lambda i: (0, 0)),
            pl.BlockSpec((1, 1), lambda i: (0, 0)),
        ],
        out_specs=pl.BlockSpec((None, S, Ch), lambda i: (i, 0, 0)),
        out_shape=jax.ShapeDtypeStruct((B, S, Ch), x_atten_rows.dtype),
        compiler_params=pltpu.CompilerParams(
            dimension_semantics=("parallel",), vmem_limit_bytes=_VMEM_LIMIT),
    )(x_atten_rows, x_cnn_rows, w1, b1.reshape(1, Cm), w2, b2.reshape(1, 1))


def _merge_proj_kernel(xa_ref, xc_ref, g_ref, bn_ref, wa_ref, wc_ref, b_ref, o_ref, *, eps):
    """Fused attn_norm(LayerNorm) + concat + proj (split-weight matmul)."""
    a = _ln(xa_ref[...], g_ref[...], bn_ref[...], eps)
    y = _dot(a, wa_ref[...]) + _dot(xc_ref[...], wc_ref[...]) + b_ref[...]
    o_ref[...] = y.astype(o_ref.dtype)


def _mlp_kernel(x_ref, g_ref, bn_ref, w1_ref, b1_ref, w2_ref, b2_ref, o_ref, *, eps):
    """Fused norm2 + fc1 + GELU + fc2 + residual (hidden stays on-chip)."""
    x = x_ref[...]
    xn = _ln(x, g_ref[...], bn_ref[...], eps)
    h = _gelu(_dot(xn, w1_ref[...]) + b1_ref[...])
    y = _dot(h, w2_ref[...]) + b2_ref[...]
    o_ref[...] = (x + y).astype(o_ref.dtype)


# -----------------------------------------------------------------------------
# windowing helpers (XLA glue; only used around the attention kernel)
# -----------------------------------------------------------------------------

def window_partition(x, ws):
    B, D, H, W, C = x.shape
    x = x.reshape(B, D // ws[0], ws[0], H // ws[1], ws[1], W // ws[2], ws[2], C)
    x = x.transpose(0, 1, 3, 5, 2, 4, 6, 7)
    return x.reshape(-1, ws[0] * ws[1] * ws[2], C)


def window_reverse(win, ws, D, H, W):
    C = win.shape[-1]
    d, h, w = D // ws[0], H // ws[1], W // ws[2]
    B = win.shape[0] // (d * h * w)
    x = win.reshape(B, d, h, w, ws[0], ws[1], ws[2], C)
    x = x.transpose(0, 1, 4, 2, 5, 3, 6, 7)
    return x.reshape(B, D, H, W, C)


# -----------------------------------------------------------------------------
# module forward passes
# -----------------------------------------------------------------------------

def mixing_block_fwd(p, x, D, H, W, ws, nh):
    B, L, C = x.shape
    Ch = C // 2
    hd = Ch // nh
    scale = hd ** (-0.5)
    attn = p['attn']
    shortcut = x

    # ---- norm1 ----
    xn = layernorm_rows(x.reshape(B * L, C), p['norm1_g'], p['norm1_b'], eps=1e-5)
    xv = xn.reshape(B, D, H, W, C)

    # ---- pad to window multiples ----
    pad_d, pad_h, pad_w = (-D) % ws[0], (-H) % ws[1], (-W) % ws[2]
    if pad_d or pad_h or pad_w:
        xv = jnp.pad(xv, ((0, 0), (0, pad_d), (0, pad_h), (0, pad_w), (0, 0)))
    Dp, Hp, Wp = D + pad_d, H + pad_h, W + pad_w
    S = Dp * Hp * Wp
    M = B * S
    rows = xv.reshape(M, C)

    # ---- fused proj_attn -> LN -> qkv   and   proj_cnn -> LN ----
    qkv_rows, xcnn_rows = _row_call(
        functools.partial(_proj_qkv_cnn_kernel, eps=1e-5),
        [rows],
        [attn['proj_attn_w'], attn['proj_attn_b'].reshape(1, Ch),
         attn['proj_attn_norm_g'].reshape(1, Ch), attn['proj_attn_norm_b'].reshape(1, Ch),
         attn['qkv_w'], attn['qkv_b'].reshape(1, 3 * Ch),
         attn['proj_cnn_w'], attn['proj_cnn_b'].reshape(1, C),
         attn['proj_cnn_norm_g'].reshape(1, C), attn['proj_cnn_norm_b'].reshape(1, C)],
        [jax.ShapeDtypeStruct((M, 3 * Ch), x.dtype),
         jax.ShapeDtypeStruct((M, C), x.dtype)])

    # ---- convolutional branch: dwconv + IN + GELU + pool + 1x1 projection ----
    conv = dwconv3d(xcnn_rows.reshape(B, Dp, Hp, Wp, C), attn['dw_w'], attn['dw_b'])
    xcnn_proj, pooled = cnn_post(conv.reshape(B, S, C), attn['projc_w'], attn['projc_b'])
    cimod = channel_interaction(pooled, attn['ci1_w'], attn['ci1_b'],
                                attn['ci2_w'], attn['ci2_b'])            # (B, Ch), sigmoid applied

    # ---- window attention (grid over windows, shared bias, fused modulation) ----
    qkv_win = window_partition(qkv_rows.reshape(B, Dp, Hp, Wp, 3 * Ch), ws)  # (B_, N, 3Ch)
    nW = qkv_win.shape[0] // B
    attn_win = window_attention(qkv_win, attn['rpb'], cimod.reshape(B, 1, Ch),
                                nW, nh, hd, scale)                        # (B_, N, Ch)
    x_atten2 = window_reverse(attn_win, ws, Dp, Hp, Wp)                   # (B, Dp, Hp, Wp, Ch)

    # ---- spatial interaction + sigmoid gate + conv_norm ----
    xcnn_final = spatial_gate(x_atten2.reshape(B, S, Ch), xcnn_proj,
                              attn['si1_w'], attn['si1_b'],
                              attn['si2_w'], attn['si2_b'])               # (B, S, Ch)

    # ---- attn_norm + concat + proj ----
    out_rows = _row_call(
        functools.partial(_merge_proj_kernel, eps=1e-5),
        [x_atten2.reshape(M, Ch), xcnn_final.reshape(M, Ch)],
        [attn['attn_norm_g'].reshape(1, Ch), attn['attn_norm_b'].reshape(1, Ch),
         attn['proj_w'][:Ch], attn['proj_w'][Ch:], attn['proj_b'].reshape(1, C)],
        jax.ShapeDtypeStruct((M, C), x.dtype))

    out_vol = out_rows.reshape(B, Dp, Hp, Wp, C)
    if pad_d or pad_h or pad_w:
        out_vol = out_vol[:, :D, :H, :W, :]
    x = shortcut + out_vol.reshape(B, L, C)

    # ---- MLP (norm2 + fc1 + GELU + fc2 + residual fused) ----
    hidden = p['fc1_w'].shape[1]
    x = _row_call(
        functools.partial(_mlp_kernel, eps=1e-5),
        [x.reshape(B * L, C)],
        [p['norm2_g'].reshape(1, C), p['norm2_b'].reshape(1, C),
         p['fc1_w'], p['fc1_b'].reshape(1, hidden),
         p['fc2_w'], p['fc2_b'].reshape(1, C)],
        jax.ShapeDtypeStruct((B * L, C), x.dtype)).reshape(B, L, C)
    return x


def basic_layer_fwd(params, x):
    """BasicLayer forward. x: (B, C, D, H, W) -> (B, C, D, H, W)."""
    B, C, D, H, W = x.shape
    xs = jnp.transpose(x, (0, 2, 3, 4, 1)).reshape(B, D * H * W, C)
    for bp in params['blocks']:
        xs = mixing_block_fwd(bp, xs, D, H, W, params['ws'], params['nh'])
    xs = layernorm_rows(xs.reshape(B * D * H * W, C),
                        params['norm_g'], params['norm_b'], eps=1e-6)
    return xs.reshape(B, D, H, W, C).transpose(0, 4, 1, 2, 3)


# -----------------------------------------------------------------------------
# deterministic synthetic parameter initialization
# -----------------------------------------------------------------------------

def init_params(key, *, dim, depth, num_heads, window_size, dwconv_kernel_size,
                mlp_ratio):
    ws = (window_size,) * 3
    C, Ch, K = dim, dim // 2, dwconv_kernel_size
    hidden = int(dim * mlp_ratio) // 2
    N = ws[0] * ws[1] * ws[2]
    keys = iter(jax.random.split(key, depth * 40 + 8))

    def nrm(shape, s=0.02):
        return s * jax.random.normal(next(keys), shape, jnp.float32)

    ones = lambda shape: jnp.ones(shape, jnp.float32)
    zeros = lambda shape: jnp.zeros(shape, jnp.float32)

    # relative_position_index (same construction as the PyTorch module)
    coords = np.stack(np.meshgrid(np.arange(ws[0]), np.arange(ws[1]),
                                  np.arange(ws[2]), indexing='ij'))
    cf = coords.reshape(3, -1)
    rel = (cf[:, :, None] - cf[:, None, :]).transpose(1, 2, 0).astype(np.int64)
    rel[:, :, 0] += ws[0] - 1
    rel[:, :, 1] += ws[1] - 1
    rel[:, :, 2] += ws[2] - 1
    rel[:, :, 0] *= (2 * ws[1] - 1) * (2 * ws[2] - 1)
    rel[:, :, 1] *= (2 * ws[2] - 1)
    rpi = jnp.asarray(rel.sum(-1), dtype=jnp.int32)                 # (N, N)

    blocks = []
    for _ in range(depth):
        rpb_table = nrm(((2 * ws[0] - 1) * (2 * ws[1] - 1) * (2 * ws[2] - 1),
                         num_heads))
        # pre-gather the relative-position bias once (rpi is static)
        rpb = jnp.take(rpb_table, rpi.reshape(-1), axis=0).reshape(N, N, num_heads)
        rpb = jnp.transpose(rpb, (2, 0, 1))                         # (nh, N, N)
        attn = dict(
            proj_attn_w=nrm((C, Ch)), proj_attn_b=nrm((Ch,)),
            proj_attn_norm_g=ones((Ch,)), proj_attn_norm_b=zeros((Ch,)),
            proj_cnn_w=nrm((C, C)), proj_cnn_b=nrm((C,)),
            proj_cnn_norm_g=ones((C,)), proj_cnn_norm_b=zeros((C,)),
            dw_w=nrm((K, K, K, C)), dw_b=nrm((C,)),
            ci1_w=nrm((C, C // 8)), ci1_b=nrm((C // 8,)),
            ci2_w=nrm((C // 8, Ch)), ci2_b=nrm((Ch,)),
            projc_w=nrm((C, Ch)), projc_b=nrm((Ch,)),
            qkv_w=nrm((Ch, 3 * Ch)), qkv_b=nrm((3 * Ch,)),
            si1_w=nrm((Ch, C // 16)), si1_b=nrm((C // 16,)),
            si2_w=nrm((C // 16, 1)), si2_b=nrm((1,)),
            attn_norm_g=ones((Ch,)), attn_norm_b=zeros((Ch,)),
            rpb=rpb,
            proj_w=nrm((C, C)), proj_b=nrm((C,)),
        )
        blocks.append(dict(
            norm1_g=ones((C,)), norm1_b=zeros((C,)),
            norm2_g=ones((C,)), norm2_b=zeros((C,)),
            fc1_w=nrm((C, hidden)), fc1_b=nrm((hidden,)),
            fc2_w=nrm((hidden, C)), fc2_b=nrm((C,)),
            attn=attn,
        ))
    return dict(blocks=blocks, norm_g=ones((C,)), norm_b=zeros((C,)),
                ws=ws, nh=num_heads)


# -----------------------------------------------------------------------------
# main
# -----------------------------------------------------------------------------

if __name__ == "__main__":
    B, dim, D, H, W = 2, 32, 4, 4, 4
    depth, num_heads, window_size = 2, 4, 2

    key = jax.random.PRNGKey(0)
    kp, kx = jax.random.split(key)
    params = init_params(kp, dim=dim, depth=depth, num_heads=num_heads,
                         window_size=window_size, dwconv_kernel_size=3,
                         mlp_ratio=4.0)
    x = jax.random.normal(kx, (B, dim, D, H, W), jnp.float32)

    out = basic_layer_fwd(params, x)
    out = jax.block_until_ready(out)

    assert out.shape == (B, dim, D, H, W), out.shape
    assert bool(jnp.all(jnp.isfinite(out)))
    print("KERNEL_OK")
</pallas_src>

<mosaic_0001>
module attributes {stable_mosaic.version = 11 : i64} {
  func.func @_layernorm_kernel(%arg0: i32, %arg1: memref<128x32xf32, #tpu.memory_space<vmem>>, %arg2: memref<1x32xf32, #tpu.memory_space<vmem>>, %arg3: memref<1x32xf32, #tpu.memory_space<vmem>>, %arg4: memref<128x32xf32, #tpu.memory_space<vmem>>) attributes {dimension_semantics = [#tpu.dimension_semantics<parallel>], iteration_bounds = array<i64: 1>, scalar_prefetch = 0 : i64, scratch_operands = 0 : i64, tpu.core_type = #tpu.core_type<tc>, window_params = [{transform_indices = @transform_0, window_bounds = array<i64: 128, 32>}, {pipeline_mode = #tpu.pipeline_mode<synchronous>, transform_indices = @transform_1, window_bounds = array<i64: 1, 32>}, {pipeline_mode = #tpu.pipeline_mode<synchronous>, transform_indices = @transform_2, window_bounds = array<i64: 1, 32>}, {transform_indices = @transform_3, window_bounds = array<i64: 128, 32>}]} {
    %c0 = arith.constant 0 : index
    %c0_0 = arith.constant 0 : index
    %0 = vector.load %arg1[%c0, %c0_0] : memref<128x32xf32, #tpu.memory_space<vmem>>, vector<128x32xf32>
    %c0_1 = arith.constant 0 : index
    %c0_2 = arith.constant 0 : index
    %1 = vector.load %arg2[%c0_1, %c0_2] : memref<1x32xf32, #tpu.memory_space<vmem>>, vector<1x32xf32>
    %c0_3 = arith.constant 0 : index
    %c0_4 = arith.constant 0 : index
    %2 = vector.load %arg3[%c0_3, %c0_4] : memref<1x32xf32, #tpu.memory_space<vmem>>, vector<1x32xf32>
    %cst = arith.constant dense<0.000000e+00> : vector<128xf32>
    %3 = vector.multi_reduction <add>, %0, %cst [1] : vector<128x32xf32> to vector<128xf32>
    %4 = vector.shape_cast %3 : vector<128xf32> to vector<128x1xf32>
    %cst_5 = arith.constant 3.200000e+01 : f32
    %5 = vector.broadcast %cst_5 : f32 to vector<128x1xf32>
    %6 = arith.divf %4, %5 : vector<128x1xf32>
    %7 = vector.broadcast %6 : vector<128x1xf32> to vector<128x32xf32>
    %8 = arith.subf %0, %7 : vector<128x32xf32>
    %9 = arith.mulf %8, %8 : vector<128x32xf32>
    %cst_6 = arith.constant dense<0.000000e+00> : vector<128xf32>
    %10 = vector.multi_reduction <add>, %9, %cst_6 [1] : vector<128x32xf32> to vector<128xf32>
    %11 = vector.shape_cast %10 : vector<128xf32> to vector<128x1xf32>
    %cst_7 = arith.constant 3.200000e+01 : f32
    %12 = vector.broadcast %cst_7 : f32 to vector<128x1xf32>
    %13 = arith.divf %11, %12 : vector<128x1xf32>
    %cst_8 = arith.constant 9.99999974E-6 : f32
    %14 = vector.broadcast %cst_8 : f32 to vector<128x1xf32>
    %15 = arith.addf %13, %14 : vector<128x1xf32>
    %16 = math.rsqrt %15 : vector<128x1xf32>
    %17 = vector.broadcast %16 : vector<128x1xf32> to vector<128x32xf32>
    %18 = arith.mulf %8, %17 : vector<128x32xf32>
    %19 = vector.broadcast %1 : vector<1x32xf32> to vector<128x32xf32>
    %20 = arith.mulf %18, %19 : vector<128x32xf32>
    %21 = vector.broadcast %2 : vector<1x32xf32> to vector<128x32xf32>
    %22 = arith.addf %20, %21 : vector<128x32xf32>
    %c0_9 = arith.constant 0 : index
    %c0_10 = arith.constant 0 : index
    %23 = vector.load %arg4[%c0_9, %c0_10] : memref<128x32xf32, #tpu.memory_space<vmem>>, vector<128x32xf32>
    tpu.vector_store %arg4[%c0_9, %c0_10], %22 {strides = array<i32>} : memref<128x32xf32, #tpu.memory_space<vmem>>, vector<128x32xf32>,
    return
  }
  func.func @transform_0(%arg0: i32) -> (i32, i32) {
    %c0_i32 = arith.constant 0 : i32
    %c0_i32_0 = arith.constant 0 : i32
    return %arg0, %c0_i32 : i32, i32
  }
  func.func @transform_1(%arg0: i32) -> (i32, i32) {
    %c0_i32 = arith.constant 0 : i32
    %c0_i32_0 = arith.constant 0 : i32
    %c0_i32_1 = arith.constant 0 : i32
    return %c0_i32, %c0_i32_0 : i32, i32
  }
  func.func @transform_2(%arg0: i32) -> (i32, i32) {
    %c0_i32 = arith.constant 0 : i32
    %c0_i32_0 = arith.constant 0 : i32
    %c0_i32_1 = arith.constant 0 : i32
    return %c0_i32, %c0_i32_0 : i32, i32
  }
  func.func @transform_3(%arg0: i32) -> (i32, i32) {
    %c0_i32 = arith.constant 0 : i32
    %c0_i32_0 = arith.constant 0 : i32
    return %arg0, %c0_i32 : i32, i32
  }
}

</mosaic_0001>

<llo_original>
// kernel: tpu_custom_call.1
$region0: #{tpu_custom_call.1}
  #allocation0 [shape = 'u32[]', space=smem, size = 0x4, offset = 0x4, fixed_abs, tag = 'smem constant byte address 0x4 - core index']
  #allocation1 [shape = 'u32[144,128]{1,0:T(1,128)}', space=vmem, size = 0x12000, scoped, tag = 'internal scratch']
  %s0 = inlined_call_operand.vmem [shape: f32[128,32], index: 0, kind: input, shape index: {}]
  %s1 = inlined_call_operand.vmem [shape: f32[1,32], index: 1, kind: input, shape index: {}]
  %s2 = inlined_call_operand.vmem [shape: f32[1,32], index: 2, kind: input, shape index: {}]
  %s3 = inlined_call_operand.vmem [shape: f32[128,32], index: 3, kind: output, shape index: {}]
  %s4 = sld [smem:[#allocation0]]
  $region22: #{tpu_custom_call.1} parent=0
    _
  %s6 = ssub.s32 1, %s4
  %s7 = scalar_select 0, %s6, %s4
  // Predicated region
  $region2: #{tpu_custom_call.1} parent=0 // pred_check
    _
  $region3: #{tpu_custom_call.1} parent=0 // pred_check_branch
    %9 = sbr.rel (0) target = $region5
  $region4: #{tpu_custom_call.1} parent=0 // pred_region
    _
  $region5: #{tpu_custom_call.1} parent=0 // pred_fallthru
    _
  // Predicated region
  $region6: #{tpu_custom_call.1} parent=0 // pred_check
    _
  $region7: #{tpu_custom_call.1} parent=0 // pred_check_branch
    %11 = sbr.rel (0) target = $region9
  $region8: #{tpu_custom_call.1} parent=0 // pred_region
    _
  $region9: #{tpu_custom_call.1} parent=0 // pred_fallthru
    _
  // Predicated region
  $region10: #{tpu_custom_call.1} parent=0 // pred_check
    _
  $region11: #{tpu_custom_call.1} parent=0 // pred_check_branch
    %13 = sbr.rel (0) target = $region13
  $region12: #{tpu_custom_call.1} parent=0 // pred_region
    _
  $region13: #{tpu_custom_call.1} parent=0 // pred_fallthru
    _
  %v14 = vld [vmem:[%s0] sm:$0xff]
  %v15 = vld [vmem:[%s0 + $0x8] sm:$0xff]
  %v16 = vld [vmem:[%s0 + $0x10] sm:$0xff]
  %v17 = vld [vmem:[%s0 + $0x18] sm:$0xff]
  %v18 = vld [vmem:[%s0 + $0x20] sm:$0xff]
  %v19 = vld [vmem:[%s0 + $0x28] sm:$0xff]
  %v20 = vld [vmem:[%s0 + $0x30] sm:$0xff]
  %v21 = vld [vmem:[%s0 + $0x38] sm:$0xff]
  %v22 = vld [vmem:[%s0 + $0x40] sm:$0xff]
  %v23 = vld [vmem:[%s0 + $0x48] sm:$0xff]
  %v24 = vld [vmem:[%s0 + $0x50] sm:$0xff]
  %v25 = vld [vmem:[%s0 + $0x58] sm:$0xff]
  %v26 = vld [vmem:[%s0 + $0x60] sm:$0xff]
  %v27 = vld [vmem:[%s0 + $0x68] sm:$0xff]
  %v28 = vld [vmem:[%s0 + $0x70] sm:$0xff]
  %v29 = vld [vmem:[%s0 + $0x78] sm:$0xff]
  %v30 = vld [vmem:[%s1] sm:$0x1]
  %v31 = vld [vmem:[%s2] sm:$0x1]
  %vm32 = vcmask 261120
  %v33 = vsel %vm32, %v14, 0.0
  %34 = vadd.xlane.f32.xlu0 %v33
  %v35 = vpop.xlane.xlu0 %34
  %v36 = vsel %vm32, %v15, 0.0
  %37 = vadd.xlane.f32.xlu0 %v36
  %v38 = vpop.xlane.xlu0 %37
  %v39 = vsel %vm32, %v16, 0.0
  %40 = vadd.xlane.f32.xlu0 %v39
  %v41 = vpop.xlane.xlu0 %40
  %v42 = vsel %vm32, %v17, 0.0
  %43 = vadd.xlane.f32.xlu0 %v42
  %v44 = vpop.xlane.xlu0 %43
  %v45 = vsel %vm32, %v18, 0.0
  %46 = vadd.xlane.f32.xlu0 %v45
  %v47 = vpop.xlane.xlu0 %46
  %v48 = vsel %vm32, %v19, 0.0
  %49 = vadd.xlane.f32.xlu0 %v48
  %v50 = vpop.xlane.xlu0 %49
  %v51 = vsel %vm32, %v20, 0.0
  %52 = vadd.xlane.f32.xlu0 %v51
  %v53 = vpop.xlane.xlu0 %52
  %v54 = vsel %vm32, %v21, 0.0
  %55 = vadd.xlane.f32.xlu0 %v54
  %v56 = vpop.xlane.xlu0 %55
  %v57 = vsel %vm32, %v22, 0.0
  %58 = vadd.xlane.f32.xlu0 %v57
  %v59 = vpop.xlane.xlu0 %58
  %v60 = vsel %vm32, %v23, 0.0
  %61 = vadd.xlane.f32.xlu0 %v60
  %v62 = vpop.xlane.xlu0 %61
  %v63 = vsel %vm32, %v24, 0.0
  %64 = vadd.xlane.f32.xlu0 %v63
  %v65 = vpop.xlane.xlu0 %64
  %v66 = vsel %vm32, %v25, 0.0
  %67 = vadd.xlane.f32.xlu0 %v66
  %v68 = vpop.xlane.xlu0 %67
  %v69 = vsel %vm32, %v26, 0.0
  %70 = vadd.xlane.f32.xlu0 %v69
  %v71 = vpop.xlane.xlu0 %70
  %v72 = vsel %vm32, %v27, 0.0
  %73 = vadd.xlane.f32.xlu0 %v72
  %v74 = vpop.xlane.xlu0 %73
  %v75 = vsel %vm32, %v28, 0.0
  %76 = vadd.xlane.f32.xlu0 %v75
  %v77 = vpop.xlane.xlu0 %76
  %v78 = vsel %vm32, %v29, 0.0
  %79 = vadd.xlane.f32.xlu0 %v78
  %v80 = vpop.xlane.xlu0 %79
  %v81 = vrcp.pop 32.0
  %v82 = vmul.f32 %v35, %v81
  %v83 = vmul.f32 %v38, %v81
  %v84 = vmul.f32 %v41, %v81
  %v85 = vmul.f32 %v44, %v81
  %v86 = vmul.f32 %v47, %v81
  %v87 = vmul.f32 %v50, %v81
  %v88 = vmul.f32 %v53, %v81
  %v89 = vmul.f32 %v56, %v81
  %v90 = vmul.f32 %v59, %v81
  %v91 = vmul.f32 %v62, %v81
  %v92 = vmul.f32 %v65, %v81
  %v93 = vmul.f32 %v68, %v81
  %v94 = vmul.f32 %v71, %v81
  %v95 = vmul.f32 %v74, %v81
  %v96 = vmul.f32 %v77, %v81
  %v97 = vmul.f32 %v80, %v81
  %v98 = vsub.f32 %v14, %v82
  %v99 = vsub.f32 %v15, %v83
  %v100 = vsub.f32 %v16, %v84
  %v101 = vsub.f32 %v17, %v85
  %v102 = vsub.f32 %v18, %v86
  %v103 = vsub.f32 %v19, %v87
  %v104 = vsub.f32 %v20, %v88
  %v105 = vsub.f32 %v21, %v89
  %v106 = vsub.f32 %v22, %v90
  %v107 = vsub.f32 %v23, %v91
  %v108 = vsub.f32 %v24, %v92
  %v109 = vsub.f32 %v25, %v93
  %v110 = vsub.f32 %v26, %v94
  %v111 = vsub.f32 %v27, %v95
  %v112 = vsub.f32 %v28, %v96
  %v113 = vsub.f32 %v29, %v97
  %v114 = vmul.f32 %v98, %v98
  %v115 = vmul.f32 %v99, %v99
  %v116 = vmul.f32 %v100, %v100
  %v117 = vmul.f32 %v101, %v101
  %v118 = vmul.f32 %v102, %v102
  %v119 = vmul.f32 %v103, %v103
  %v120 = vmul.f32 %v104, %v104
  %v121 = vmul.f32 %v105, %v105
  %v122 = vmul.f32 %v106, %v106
  %v123 = vmul.f32 %v107, %v107
  %v124 = vmul.f32 %v108, %v108
  %v125 = vmul.f32 %v109, %v109
  %v126 = vmul.f32 %v110, %v110
  %v127 = vmul.f32 %v111, %v111
  %v128 = vmul.f32 %v112, %v112
  %v129 = vmul.f32 %v113, %v113
  %v130 = vsel %vm32, %v114, 0.0
  %131 = vadd.xlane.f32.xlu0 %v130
  %v132 = vpop.xlane.xlu0 %131
  %v133 = vsel %vm32, %v115, 0.0
  %134 = vadd.xlane.f32.xlu0 %v133
  %v135 = vpop.xlane.xlu0 %134
  %v136 = vsel %vm32, %v116, 0.0
  %137 = vadd.xlane.f32.xlu0 %v136
  %v138 = vpop.xlane.xlu0 %137
  %v139 = vsel %vm32, %v117, 0.0
  %140 = vadd.xlane.f32.xlu0 %v139
  %v141 = vpop.xlane.xlu0 %140
  %v142 = vsel %vm32, %v118, 0.0
  %143 = vadd.xlane.f32.xlu0 %v142
  %v144 = vpop.xlane.xlu0 %143
  %v145 = vsel %vm32, %v119, 0.0
  %146 = vadd.xlane.f32.xlu0 %v145
  %v147 = vpop.xlane.xlu0 %146
  %v148 = vsel %vm32, %v120, 0.0
  %149 = vadd.xlane.f32.xlu0 %v148
  %v150 = vpop.xlane.xlu0 %149
  %v151 = vsel %vm32, %v121, 0.0
  %152 = vadd.xlane.f32.xlu0 %v151
  %v153 = vpop.xlane.xlu0 %152
  %v154 = vsel %vm32, %v122, 0.0
  %155 = vadd.xlane.f32.xlu0 %v154
  %v156 = vpop.xlane.xlu0 %155
  %v157 = vsel %vm32, %v123, 0.0
  %158 = vadd.xlane.f32.xlu0 %v157
  %v159 = vpop.xlane.xlu0 %158
  %v160 = vsel %vm32, %v124, 0.0
  %161 = vadd.xlane.f32.xlu0 %v160
  %v162 = vpop.xlane.xlu0 %161
  %v163 = vsel %vm32, %v125, 0.0
  %164 = vadd.xlane.f32.xlu0 %v163
  %v165 = vpop.xlane.xlu0 %164
  %v166 = vsel %vm32, %v126, 0.0
  %167 = vadd.xlane.f32.xlu0 %v166
  %v168 = vpop.xlane.xlu0 %167
  %v169 = vsel %vm32, %v127, 0.0
  %170 = vadd.xlane.f32.xlu0 %v169
  %v171 = vpop.xlane.xlu0 %170
  %v172 = vsel %vm32, %v128, 0.0
  %173 = vadd.xlane.f32.xlu0 %v172
  %v174 = vpop.xlane.xlu0 %173
  %v175 = vsel %vm32, %v129, 0.0
  %176 = vadd.xlane.f32.xlu0 %v175
  %v177 = vpop.xlane.xlu0 %176
  %v178 = vmul.f32 %v132, %v81
  %v179 = vmul.f32 %v135, %v81
  %v180 = vmul.f32 %v138, %v81
  %v181 = vmul.f32 %v141, %v81
  %v182 = vmul.f32 %v144, %v81
  %v183 = vmul.f32 %v147, %v81
  %v184 = vmul.f32 %v150, %v81
  %v185 = vmul.f32 %v153, %v81
  %v186 = vmul.f32 %v156, %v81
  %v187 = vmul.f32 %v159, %v81
  %v188 = vmul.f32 %v162, %v81
  %v189 = vmul.f32 %v165, %v81
  %v190 = vmul.f32 %v168, %v81
  %v191 = vmul.f32 %v171, %v81
  %v192 = vmul.f32 %v174, %v81
  %v193 = vmul.f32 %v177, %v81
  %v194 = vadd.f32 %v178, 1e-05
  %v195 = vadd.f32 %v179, 1e-05
  %v196 = vadd.f32 %v180, 1e-05
  %v197 = vadd.f32 %v181, 1e-05
  %v198 = vadd.f32 %v182, 1e-05
  %v199 = vadd.f32 %v183, 1e-05
  %v200 = vadd.f32 %v184, 1e-05
  %v201 = vadd.f32 %v185, 1e-05
  %v202 = vadd.f32 %v186, 1e-05
  %v203 = vadd.f32 %v187, 1e-05
  %v204 = vadd.f32 %v188, 1e-05
  %v205 = vadd.f32 %v189, 1e-05
  %v206 = vadd.f32 %v190, 1e-05
  %v207 = vadd.f32 %v191, 1e-05
  %v208 = vadd.f32 %v192, 1e-05
  %v209 = vadd.f32 %v193, 1e-05
  %v210 = vrsqrt.pop %v194
  %v211 = vrsqrt.pop %v195
  %v212 = vrsqrt.pop %v196
  %v213 = vrsqrt.pop %v197
  %v214 = vrsqrt.pop %v198
  %v215 = vrsqrt.pop %v199
  %v216 = vrsqrt.pop %v200
  %v217 = vrsqrt.pop %v201
  %v218 = vrsqrt.pop %v202
  %v219 = vrsqrt.pop %v203
  %v220 = vrsqrt.pop %v204
  %v221 = vrsqrt.pop %v205
  %v222 = vrsqrt.pop %v206
  %v223 = vrsqrt.pop %v207
  %v224 = vrsqrt.pop %v208
  %v225 = vrsqrt.pop %v209
  %v226 = vmul.f32 %v98, %v210
  %v227 = vmul.f32 %v99, %v211
  %v228 = vmul.f32 %v100, %v212
  %v229 = vmul.f32 %v101, %v213
  %v230 = vmul.f32 %v102, %v214
  %v231 = vmul.f32 %v103, %v215
  %v232 = vmul.f32 %v104, %v216
  %v233 = vmul.f32 %v105, %v217
  %v234 = vmul.f32 %v106, %v218
  %v235 = vmul.f32 %v107, %v219
  %v236 = vmul.f32 %v108, %v220
  %v237 = vmul.f32 %v109, %v221
  %v238 = vmul.f32 %v110, %v222
  %v239 = vmul.f32 %v111, %v223
  %v240 = vmul.f32 %v112, %v224
  %v241 = vmul.f32 %v113, %v225
  %v243 = vlaneseq
  %v244 = vshrl.u32 %v243, 7
  %v245 = vsub.s32 0, %v244
  %v246 = vrot.slane %v30, %v245
  %v248 = vmul.f32 %v226, %v246
  %v249 = vmul.f32 %v227, %v246
  %v250 = vmul.f32 %v228, %v246
  %v251 = vmul.f32 %v229, %v246
  %v252 = vmul.f32 %v230, %v246
  %v253 = vmul.f32 %v231, %v246
  %v254 = vmul.f32 %v232, %v246
  %v255 = vmul.f32 %v233, %v246
  %v256 = vmul.f32 %v234, %v246
  %v257 = vmul.f32 %v235, %v246
  %v258 = vmul.f32 %v236, %v246
  %v259 = vmul.f32 %v237, %v246
  %v260 = vmul.f32 %v238, %v246
  %v261 = vmul.f32 %v239, %v246
  %v262 = vmul.f32 %v240, %v246
  %v263 = vmul.f32 %v241, %v246
  %v265 = vlaneseq
  %v266 = vshrl.u32 %v265, 7
  %v267 = vsub.s32 0, %v266
  %v268 = vrot.slane %v31, %v267
  %v270 = vadd.f32 %v248, %v268
  %v271 = vadd.f32 %v249, %v268
  %v272 = vadd.f32 %v250, %v268
  %v273 = vadd.f32 %v251, %v268
  %v274 = vadd.f32 %v252, %v268
  %v275 = vadd.f32 %v253, %v268
  %v276 = vadd.f32 %v254, %v268
  %v277 = vadd.f32 %v255, %v268
  %v278 = vadd.f32 %v256, %v268
  %v279 = vadd.f32 %v257, %v268
  %v280 = vadd.f32 %v258, %v268
  %v281 = vadd.f32 %v259, %v268
  %v282 = vadd.f32 %v260, %v268
  %v283 = vadd.f32 %v261, %v268
  %v284 = vadd.f32 %v262, %v268
  %v285 = vadd.f32 %v263, %v268
  %286 = vst.msk [vmem:[%s3] sm:$0xff] %vm32, %v270
  %287 = vst.msk [vmem:[%s3 + $0x8] sm:$0xff] %vm32, %v271
  %288 = vst.msk [vmem:[%s3 + $0x10] sm:$0xff] %vm32, %v272
  %289 = vst.msk [vmem:[%s3 + $0x18] sm:$0xff] %vm32, %v273
  %290 = vst.msk [vmem:[%s3 + $0x20] sm:$0xff] %vm32, %v274
  %291 = vst.msk [vmem:[%s3 + $0x28] sm:$0xff] %vm32, %v275
  %292 = vst.msk [vmem:[%s3 + $0x30] sm:$0xff] %vm32, %v276
  %293 = vst.msk [vmem:[%s3 + $0x38] sm:$0xff] %vm32, %v277
  %294 = vst.msk [vmem:[%s3 + $0x40] sm:$0xff] %vm32, %v278
  %295 = vst.msk [vmem:[%s3 + $0x48] sm:$0xff] %vm32, %v279
  %296 = vst.msk [vmem:[%s3 + $0x50] sm:$0xff] %vm32, %v280
  %297 = vst.msk [vmem:[%s3 + $0x58] sm:$0xff] %vm32, %v281
  %298 = vst.msk [vmem:[%s3 + $0x60] sm:$0xff] %vm32, %v282
  %299 = vst.msk [vmem:[%s3 + $0x68] sm:$0xff] %vm32, %v283
  %300 = vst.msk [vmem:[%s3 + $0x70] sm:$0xff] %vm32, %v284
  %301 = vst.msk [vmem:[%s3 + $0x78] sm:$0xff] %vm32, %v285
  // Predicated region
  $region14: #{tpu_custom_call.1} parent=0 // pred_check
    _
  $region15: #{tpu_custom_call.1} parent=0 // pred_check_branch
    %303 = sbr.rel (0) target = $region17
  $region16: #{tpu_custom_call.1} parent=0 // pred_region
    _
  $region17: #{tpu_custom_call.1} parent=0 // pred_fallthru
    _
  // Predicated region
  $region18: #{tpu_custom_call.1} parent=0 // pred_check
    _
  $region19: #{tpu_custom_call.1} parent=0 // pred_check_branch
    %305 = sbr.rel (0) target = $region21
  $region20: #{tpu_custom_call.1} parent=0 // pred_region
    _
  $region21: #{tpu_custom_call.1} parent=0 // pred_fallthru
    _

</llo_original>
